<compile_context>
chip_gen: v5e
topology: v5e:2x2
jax: 0.10.0
libtpu: 0.0.40
codegen_flags: <defaults>
</compile_context>

<pallas_src>
import jax
import jax.numpy as jnp
from jax.experimental import pallas as pl
from jax.experimental.pallas import tpu as pltpu


def _loss_kernel(word_tbl_ref, item_tbl_ref, item_ids_ref, words_ref, mask_ref,
                 num_ref, den_ref):
    # word_tbl_ref: (V, D)  bf16, VMEM-resident (same block every grid step)
    # item_tbl_ref: (NI, D) bf16, VMEM-resident
    # item_ids_ref: (TB, 1) int32   (streamed per batch block)
    # words_ref:    (TB, S) int32   (streamed)
    # mask_ref:     (TB, S) f32     (streamed)
    # num_ref/den_ref: (1, 1) f32 SMEM partials for this batch block
    word_tbl = word_tbl_ref[...]
    item_tbl = item_tbl_ref[...]
    item_ids = item_ids_ref[...]
    words = words_ref[...]
    mask = mask_ref[...]

    tb, s = words.shape
    v = word_tbl.shape[0]
    ni = item_tbl.shape[0]

    # --- fused item-embedding gather: exact one-hot row select on the MXU ------
    item_iota = jax.lax.broadcasted_iota(jnp.int32, (tb, ni), 1)
    item_onehot = (item_ids == item_iota).astype(item_tbl.dtype)          # (TB, NI) bf16
    item_embs = jnp.dot(item_onehot, item_tbl,
                        preferred_element_type=jnp.float32)               # (TB, D) f32
    # Values are exact bf16 table rows -> the downcast is lossless.
    item_embs = item_embs.astype(item_tbl.dtype)                          # (TB, D) bf16

    # --- scores[b, v] = <item_emb_b, word_table_v> : bf16 MXU, f32 accumulate --
    scores = jax.lax.dot_general(
        item_embs, word_tbl,
        dimension_numbers=(((1,), (1,)), ((), ())),
        preferred_element_type=jnp.float32)                               # (TB, V) f32

    # --- fused word gather: logits[b, s] = scores[b, review_words[b, s]] -------
    vocab_iota = jax.lax.broadcasted_iota(jnp.int32, (tb, s, v), 2)
    word_onehot = words[:, :, None] == vocab_iota                         # (TB, S, V) bool
    logits = jnp.sum(jnp.where(word_onehot, scores[:, None, :], 0.0),
                     axis=-1)                                             # (TB, S) f32

    # --- log_softmax over the sequence axis (dim=1), numerically stable f32 ----
    m = jnp.max(logits, axis=1, keepdims=True)                            # (TB, 1)
    shifted = logits - m
    lse = jnp.log(jnp.sum(jnp.exp(shifted), axis=1, keepdims=True))
    log_probs = shifted - lse                                             # (TB, S)

    # --- per-block partials; padded batch rows carry mask == 0 -> contribute 0 -
    num_ref[0, 0] = jnp.sum(log_probs * mask)
    den_ref[0, 0] = jnp.sum(mask)


def _round_up(x, m):
    return ((x + m - 1) // m) * m


def _choose_block_b(B, S, V):
    """Batch tile so lane-padded streamed blocks + in-kernel temps stay small."""
    lanes_s = _round_up(S, 128)
    lanes_v = _round_up(V, 128)
    # Streamed bytes per batch row (double-buffered): words i32 + mask f32 + item id.
    streamed = 2 * (lanes_s * 4 + lanes_s * 4 + 128 * 4)
    # In-kernel f32 temporaries per row: one-hot select slab (S, V), scores (V),
    # plus a few (S,)-wide pieces (logits / log_probs / shifted).
    temps = _round_up(S, 8) * lanes_v * 4 + lanes_v * 4 + 4 * lanes_s * 4
    per_row = streamed + temps
    budget = 12 * 1024 * 1024          # well under the smallest (v7x) scoped VMEM
    max_rows = max(8, min(budget // max(per_row, 1), 1024))
    if B <= max_rows:
        return B                        # single block covering the full batch
    return max(8, (max_rows // 8) * 8)  # multiple-of-8 sublane-friendly tile


def item_language_model_loss(word_table, item_table, item_ids, review_words, mask):
    """(V,D), (NI,D), (B,) int32, (B,S) int32, (B,S) f32 -> scalar f32 loss."""
    V, D = word_table.shape
    NI = item_table.shape[0]
    B, S = review_words.shape

    tb = _choose_block_b(B, S, V)
    g = pl.cdiv(B, tb)
    b_pad = g * tb
    if b_pad != B:
        # Zero-pad the batch; padded rows have mask == 0 -> contribute nothing.
        pad = b_pad - B
        item_ids = jnp.pad(item_ids, ((0, pad),))
        review_words = jnp.pad(review_words, ((0, pad), (0, 0)))
        mask = jnp.pad(mask, ((0, pad), (0, 0)))

    item_ids2d = item_ids.reshape(b_pad, 1).astype(jnp.int32)
    review_words = review_words.astype(jnp.int32)
    mask = mask.astype(jnp.float32)

    partial = jax.ShapeDtypeStruct((g, 1), jnp.float32)
    num, den = pl.pallas_call(
        _loss_kernel,
        grid=(g,),
        in_specs=[
            pl.BlockSpec((V, D), lambda i: (0, 0)),    # word table, VMEM-resident
            pl.BlockSpec((NI, D), lambda i: (0, 0)),   # item table, VMEM-resident
            pl.BlockSpec((tb, 1), lambda i: (i, 0)),   # item ids (streamed)
            pl.BlockSpec((tb, S), lambda i: (i, 0)),   # review word ids (streamed)
            pl.BlockSpec((tb, S), lambda i: (i, 0)),   # mask (streamed)
        ],
        out_specs=[
            pl.BlockSpec((1, 1), lambda i: (i, 0),
                         memory_space=pltpu.MemorySpace.SMEM),
            pl.BlockSpec((1, 1), lambda i: (i, 0),
                         memory_space=pltpu.MemorySpace.SMEM),
        ],
        out_shape=(partial, partial),
        compiler_params=pltpu.CompilerParams(
            dimension_semantics=("parallel",),         # batch blocks independent
            vmem_limit_bytes=32 * 1024 * 1024,
        ),
    )(word_table, item_table, item_ids2d, review_words, mask)

    # Final reduction + divide in XLA (correct under a parallel grid; no guard on
    # sum(mask) == 0, same as the PyTorch module).
    return -jnp.sum(num) / jnp.sum(den)


def item_language_model_forward(params, item_ids, review_words, mask,
                                table_dtype=jnp.bfloat16):
    """Full forward: resident bf16 tables + fused-gather Pallas loss kernel."""
    word_table = params["word_embeddings"].astype(table_dtype)
    item_table = params["item_embeddings"].astype(table_dtype)
    return item_language_model_loss(word_table, item_table, item_ids,
                                    review_words, mask.astype(jnp.float32))


def _reference_forward(params, item_ids, review_words, mask,
                       input_dtype=jnp.float32):
    """Pure-JAX reference (mirrors the PyTorch module; optional input rounding)."""
    item_embs = jnp.take(params["item_embeddings"], item_ids, axis=0)
    word_embs = jnp.take(params["word_embeddings"], review_words, axis=0)
    item_embs = item_embs.astype(input_dtype).astype(jnp.float32)
    word_embs = word_embs.astype(input_dtype).astype(jnp.float32)
    logits = jnp.einsum("bsd,bd->bs", word_embs, item_embs)
    log_probs = jax.nn.log_softmax(logits, axis=1)
    return -jnp.sum(log_probs * mask) / jnp.sum(mask)


if __name__ == "__main__":
    # Small, deterministic problem sizes (match the PyTorch module defaults).
    num_items = 10
    vocab_size = 50
    embedding_dim = 32
    batch = 2
    seq = 8

    key = jax.random.PRNGKey(0)
    k_word, k_item, k_ids, k_words = jax.random.split(key, 4)

    params = {
        "word_embeddings": jax.random.normal(
            k_word, (vocab_size, embedding_dim), dtype=jnp.float32),
        "item_embeddings": jax.random.normal(
            k_item, (num_items, embedding_dim), dtype=jnp.float32),
    }

    item_ids = jax.random.randint(k_ids, (batch,), 0, num_items, dtype=jnp.int32)
    review_words = jax.random.randint(
        k_words, (batch, seq), 0, vocab_size, dtype=jnp.int32)
    # Deterministic mask: first row keeps 6 tokens, second keeps 4 tokens.
    lengths = jnp.array([6, 4], dtype=jnp.int32)
    mask = (jnp.arange(seq)[None, :] < lengths[:, None]).astype(jnp.float32)

    forward = jax.jit(item_language_model_forward)
    loss = forward(params, item_ids, review_words, mask)
    loss = jax.block_until_ready(loss)

    # Tight check against a reference with the same bf16 table rounding (isolates
    # the kernel math), plus a looser check against the pure-f32 module semantics
    # (bf16 table rounding only).
    ref_bf16 = _reference_forward(params, item_ids, review_words, mask,
                                  input_dtype=jnp.bfloat16)
    ref_f32 = _reference_forward(params, item_ids, review_words, mask,
                                 input_dtype=jnp.float32)
    assert jnp.allclose(loss, ref_bf16, rtol=1e-4, atol=1e-4), (loss, ref_bf16)
    assert jnp.allclose(loss, ref_f32, rtol=5e-2, atol=5e-2), (loss, ref_f32)

    print("KERNEL_OK")
</pallas_src>

<mosaic_0001>
module attributes {stable_mosaic.version = 11 : i64} {
  func.func @_loss_kernel(%arg0: i32, %arg1: memref<50x32xbf16, #tpu.memory_space<vmem>>, %arg2: memref<10x32xbf16, #tpu.memory_space<vmem>>, %arg3: memref<2x1xi32, #tpu.memory_space<vmem>>, %arg4: memref<2x8xi32, #tpu.memory_space<vmem>>, %arg5: memref<2x8xf32, #tpu.memory_space<vmem>>, %arg6: memref<1x1xf32, #tpu.memory_space<smem>>, %arg7: memref<1x1xf32, #tpu.memory_space<smem>>) attributes {dimension_semantics = [#tpu.dimension_semantics<parallel>], iteration_bounds = array<i64: 1>, scalar_prefetch = 0 : i64, scratch_operands = 0 : i64, tpu.core_type = #tpu.core_type<tc>, window_params = [{pipeline_mode = #tpu.pipeline_mode<synchronous>, transform_indices = @transform_0, window_bounds = array<i64: 50, 32>}, {pipeline_mode = #tpu.pipeline_mode<synchronous>, transform_indices = @transform_1, window_bounds = array<i64: 10, 32>}, {transform_indices = @transform_2, window_bounds = array<i64: 2, 1>}, {transform_indices = @transform_3, window_bounds = array<i64: 2, 8>}, {transform_indices = @transform_4, window_bounds = array<i64: 2, 8>}, {transform_indices = @transform_5, window_bounds = array<i64: 1, 1>}, {transform_indices = @transform_6, window_bounds = array<i64: 1, 1>}]} {
    %c0 = arith.constant 0 : index
    %c0_0 = arith.constant 0 : index
    %0 = vector.load %arg1[%c0, %c0_0] : memref<50x32xbf16, #tpu.memory_space<vmem>>, vector<50x32xbf16>
    %c0_1 = arith.constant 0 : index
    %c0_2 = arith.constant 0 : index
    %1 = vector.load %arg2[%c0_1, %c0_2] : memref<10x32xbf16, #tpu.memory_space<vmem>>, vector<10x32xbf16>
    %c0_3 = arith.constant 0 : index
    %c0_4 = arith.constant 0 : index
    %2 = vector.load %arg3[%c0_3, %c0_4] : memref<2x1xi32, #tpu.memory_space<vmem>>, vector<2x1xi32>
    %c0_5 = arith.constant 0 : index
    %c0_6 = arith.constant 0 : index
    %3 = vector.load %arg4[%c0_5, %c0_6] : memref<2x8xi32, #tpu.memory_space<vmem>>, vector<2x8xi32>
    %c0_7 = arith.constant 0 : index
    %c0_8 = arith.constant 0 : index
    %4 = vector.load %arg5[%c0_7, %c0_8] : memref<2x8xf32, #tpu.memory_space<vmem>>, vector<2x8xf32>
    %5 = tpu.iota {dimensions = array<i32: 1>} : vector<2x10xi32>
    %6 = vector.broadcast %2 : vector<2x1xi32> to vector<2x10xi32>
    %7 = arith.cmpi eq, %6, %5 : vector<2x10xi32>
    %8 = arith.extui %7 : vector<2x10xi1> to vector<2x10xi32>
    %9 = arith.sitofp %8 : vector<2x10xi32> to vector<2x10xf32>
    %10 = arith.truncf %9 : vector<2x10xf32> to vector<2x10xbf16>
    %cst = arith.constant dense<0.000000e+00> : vector<2x32xf32>
    %11 = tpu.matmul %10, %1, %cst {dimension_numbers = #tpu.dot_dimension_numbers<[1], [0], [0], [1], [0, 0, 1, 1], [], []>} : vector<2x10xbf16>, vector<10x32xbf16>, vector<2x32xf32> -> vector<2x32xf32>
    %12 = arith.truncf %11 : vector<2x32xf32> to vector<2x32xbf16>
    %cst_9 = arith.constant dense<0.000000e+00> : vector<2x50xf32>
    %13 = tpu.matmul %12, %0, %cst_9 {dimension_numbers = #tpu.dot_dimension_numbers<[1], [1], [0], [0], [0, 0, 1, 0], [], []>} : vector<2x32xbf16>, vector<50x32xbf16>, vector<2x50xf32> -> vector<2x50xf32>
    %14 = tpu.iota {dimensions = array<i32: 2>} : vector<2x8x50xi32>
    %15 = vector.shape_cast %3 : vector<2x8xi32> to vector<2x8x1xi32>
    %16 = vector.broadcast %15 : vector<2x8x1xi32> to vector<2x8x50xi32>
    %17 = arith.cmpi eq, %16, %14 : vector<2x8x50xi32>
    %18 = vector.shape_cast %13 : vector<2x50xf32> to vector<2x1x50xf32>
    %cst_10 = arith.constant 0.000000e+00 : f32
    %19 = vector.shape_cast %18 : vector<2x1x50xf32> to vector<2x1x50xf32>
    %20 = vector.broadcast %19 : vector<2x1x50xf32> to vector<2x8x50xf32>
    %21 = vector.broadcast %cst_10 : f32 to vector<2x8x50xf32>
    %22 = arith.select %17, %20, %21 : vector<2x8x50xi1>, vector<2x8x50xf32>
    %cst_11 = arith.constant dense<0.000000e+00> : vector<2x8xf32>
    %23 = vector.multi_reduction <add>, %22, %cst_11 [2] : vector<2x8x50xf32> to vector<2x8xf32>
    %cst_12 = arith.constant dense<0xFF800000> : vector<2xf32>
    %24 = vector.multi_reduction <maximumf>, %23, %cst_12 [1] : vector<2x8xf32> to vector<2xf32>
    %25 = vector.shape_cast %24 : vector<2xf32> to vector<2x1xf32>
    %26 = vector.broadcast %25 : vector<2x1xf32> to vector<2x8xf32>
    %27 = arith.subf %23, %26 : vector<2x8xf32>
    %28 = math.exp %27 : vector<2x8xf32>
    %cst_13 = arith.constant dense<0.000000e+00> : vector<2xf32>
    %29 = vector.multi_reduction <add>, %28, %cst_13 [1] : vector<2x8xf32> to vector<2xf32>
    %30 = vector.shape_cast %29 : vector<2xf32> to vector<2x1xf32>
    %31 = math.log %30 : vector<2x1xf32>
    %32 = vector.broadcast %31 : vector<2x1xf32> to vector<2x8xf32>
    %33 = arith.subf %27, %32 : vector<2x8xf32>
    %34 = arith.mulf %33, %4 : vector<2x8xf32>
    %35 = vector.shape_cast %34 : vector<2x8xf32> to vector<1x2x8xf32>
    %cst_14 = arith.constant dense<0.000000e+00> : vector<1xf32>
    %36 = vector.multi_reduction <add>, %35, %cst_14 [1, 2] : vector<1x2x8xf32> to vector<1xf32>
    %37 = vector.shape_cast %36 : vector<1xf32> to vector<1x1x1xf32>
    %38 = vector.extract %37[0, 0, 0] : f32 from vector<1x1x1xf32>
    %c0_15 = arith.constant 0 : index
    %c0_16 = arith.constant 0 : index
    %39 = memref.load %arg6[%c0_15, %c0_16] : memref<1x1xf32, #tpu.memory_space<smem>>
    memref.store %38, %arg6[%c0_15, %c0_16] : memref<1x1xf32, #tpu.memory_space<smem>>
    %40 = vector.shape_cast %4 : vector<2x8xf32> to vector<1x2x8xf32>
    %cst_17 = arith.constant dense<0.000000e+00> : vector<1xf32>
    %41 = vector.multi_reduction <add>, %40, %cst_17 [1, 2] : vector<1x2x8xf32> to vector<1xf32>
    %42 = vector.shape_cast %41 : vector<1xf32> to vector<1x1x1xf32>
    %43 = vector.extract %42[0, 0, 0] : f32 from vector<1x1x1xf32>
    %c0_18 = arith.constant 0 : index
    %c0_19 = arith.constant 0 : index
    %44 = memref.load %arg7[%c0_18, %c0_19] : memref<1x1xf32, #tpu.memory_space<smem>>
    memref.store %43, %arg7[%c0_18, %c0_19] : memref<1x1xf32, #tpu.memory_space<smem>>
    return
  }
  func.func @transform_0(%arg0: i32) -> (i32, i32) {
    %c0_i32 = arith.constant 0 : i32
    %c0_i32_0 = arith.constant 0 : i32
    %c0_i32_1 = arith.constant 0 : i32
    return %c0_i32, %c0_i32_0 : i32, i32
  }
  func.func @transform_1(%arg0: i32) -> (i32, i32) {
    %c0_i32 = arith.constant 0 : i32
    %c0_i32_0 = arith.constant 0 : i32
    %c0_i32_1 = arith.constant 0 : i32
    return %c0_i32, %c0_i32_0 : i32, i32
  }
  func.func @transform_2(%arg0: i32) -> (i32, i32) {
    %c0_i32 = arith.constant 0 : i32
    %c0_i32_0 = arith.constant 0 : i32
    return %arg0, %c0_i32 : i32, i32
  }
  func.func @transform_3(%arg0: i32) -> (i32, i32) {
    %c0_i32 = arith.constant 0 : i32
    %c0_i32_0 = arith.constant 0 : i32
    return %arg0, %c0_i32 : i32, i32
  }
  func.func @transform_4(%arg0: i32) -> (i32, i32) {
    %c0_i32 = arith.constant 0 : i32
    %c0_i32_0 = arith.constant 0 : i32
    return %arg0, %c0_i32 : i32, i32
  }
  func.func @transform_5(%arg0: i32) -> (i32, i32) {
    %c0_i32 = arith.constant 0 : i32
    %c0_i32_0 = arith.constant 0 : i32
    return %arg0, %c0_i32 : i32, i32
  }
  func.func @transform_6(%arg0: i32) -> (i32, i32) {
    %c0_i32 = arith.constant 0 : i32
    %c0_i32_0 = arith.constant 0 : i32
    return %arg0, %c0_i32 : i32, i32
  }
}

</mosaic_0001>

<llo_original>
// kernel: item_language_model_forward.1
$region0: #{item_language_model_forward.1}
  #allocation0 [shape = 'u32[]', space=smem, size = 0x4, offset = 0x4, fixed_abs, tag = 'smem constant byte address 0x4 - core index']
  #allocation1 [shape = 'u32[72,128]{1,0:T(1,128)}', space=vmem, size = 0x9000, scoped, tag = 'internal scratch']
  %s0 = inlined_call_operand.vmem [shape: bf16[50,32], index: 0, kind: input, shape index: {}]
  %s1 = inlined_call_operand.vmem [shape: bf16[10,32], index: 1, kind: input, shape index: {}]
  %s2 = inlined_call_operand.vmem [shape: s32[2,1], index: 2, kind: input, shape index: {}]
  %s3 = inlined_call_operand.vmem [shape: s32[2,8], index: 3, kind: input, shape index: {}]
  %s4 = inlined_call_operand.vmem [shape: f32[2,8], index: 4, kind: input, shape index: {}]
  %s5 = inlined_call_operand.hbm [shape: f32[1,1], index: 5, kind: output, shape index: {0}]
  %s6 = inlined_call_operand.hbm [shape: f32[1,1], index: 6, kind: output, shape index: {1}]
  %7 = xla_tuple %s5, %s6
  %s8 = sld [smem:[#allocation0]]
  $region38: #{item_language_model_forward.1} parent=0
    _
  %s10 = ssub.s32 1, %s8
  %s11 = scalar_select 0, %s10, %s8
  $region1: #{item_language_model_forward.1} parent=0
    #allocation2 [shape = 'u8[512]{0}', space=smem, size = 0x200, scoped, tag = 'output window, operand 0, single buffered']
    #allocation3 [shape = 's32[1]{0}', space=sflag, size = 0x4, scoped, tag = 'scoped memory for item_language_model_forward.1']
    #allocation4 [shape = 'u8[512]{0}', space=smem, size = 0x200, scoped, tag = 'output window, operand 1, single buffered']
    #allocation5 [shape = 's32[1]{0}', space=sflag, size = 0x4, scoped, tag = 'scoped memory for item_language_model_forward.1']
    %12 = vsyncpa [#allocation3], 0
    %13 = vsyncpa [#allocation5], 0
    // Predicated region
    $region2: #{item_language_model_forward.1} parent=1 // pred_check
      _
    $region3: #{item_language_model_forward.1} parent=1 // pred_check_branch
      %15 = sbr.rel (0) target = $region5
    $region4: #{item_language_model_forward.1} parent=1 // pred_region
      _
    $region5: #{item_language_model_forward.1} parent=1 // pred_fallthru
      _
    // Predicated region
    $region6: #{item_language_model_forward.1} parent=1 // pred_check
      _
    $region7: #{item_language_model_forward.1} parent=1 // pred_check_branch
      %17 = sbr.rel (0) target = $region9
    $region8: #{item_language_model_forward.1} parent=1 // pred_region
      _
    $region9: #{item_language_model_forward.1} parent=1 // pred_fallthru
      _
    // Predicated region
    $region10: #{item_language_model_forward.1} parent=1 // pred_check
      _
    $region11: #{item_language_model_forward.1} parent=1 // pred_check_branch
      %19 = sbr.rel (0) target = $region13
    $region12: #{item_language_model_forward.1} parent=1 // pred_region
      _
    $region13: #{item_language_model_forward.1} parent=1 // pred_fallthru
      _
    // Predicated region
    $region14: #{item_language_model_forward.1} parent=1 // pred_check
      _
    $region15: #{item_language_model_forward.1} parent=1 // pred_check_branch
      %21 = sbr.rel (0) target = $region17
    $region16: #{item_language_model_forward.1} parent=1 // pred_region
      _
    $region17: #{item_language_model_forward.1} parent=1 // pred_fallthru
      _
    // Predicated region
    $region18: #{item_language_model_forward.1} parent=1 // pred_check
      _
    $region19: #{item_language_model_forward.1} parent=1 // pred_check_branch
      %23 = sbr.rel (0) target = $region21
    $region20: #{item_language_model_forward.1} parent=1 // pred_region
      _
    $region21: #{item_language_model_forward.1} parent=1 // pred_fallthru
      _
    %v25 = vld [vmem:[%s0] sm:$0xf]
    %v26 = vld [vmem:[%s0 + $0x4] sm:$0xf]
    %v27 = vld [vmem:[%s0 + $0x8] sm:$0xf]
    %v28 = vld [vmem:[%s0 + $0xc] sm:$0xf]
    %v29 = vld [vmem:[%s0 + $0x10] sm:$0xf]
    %v30 = vld [vmem:[%s0 + $0x14] sm:$0xf]
    %v31 = vld [vmem:[%s0 + $0x18] sm:$0x1]
    %v32 = vld [vmem:[%s1] sm:$0xf]
    %v33 = vld [vmem:[%s1 + $0x4] sm:$0x1]
    %v34 = vld [vmem:[%s2] sm:$0x3]
    %v35 = vld [vmem:[%s3] sm:$0x3]
    %v36 = vld [vmem:[%s4] sm:$0x3]
    %v37 = vlaneseq
    %v38 = vand.u32 %v37, 127
    %39 = vset.pattern.permute.xlu0 0
    %40 = vperm.xlu0 %39, %v34
    %v41 = vpop.permute.xlu0 %40
    %vm42 = vcmp.eq.s32.totalorder %v41, %v38
    %v43 = vsel %vm42, 1, 0
    %v44 = vcvt.s32.f32 %v43
    %v45 = vpack.c.bf16 %v44, %v44
    %v48 = vunpack.c.l.b16 %v32
    %v49 = vunpack.c.l.b16 %v33
    %v50 = vpack.c.b16 %v49, %v48
    %vm51 = vcmask 80896
    %v53 = vsel %vm51, %v45, 0
    %vm55 = vcmask 1044480
    %v57 = vsel %vm55, %v50, 0
    %59 = vmatpush.bf16.msra.mxu0 0
    %60 = vmatpush.bf16.msra.mxu0 0
    %61 = vmatpush.bf16.msra.mxu0 0
    %62 = vmatpush.bf16.msra.mxu0 0
    %63 = vmatpush.bf16.msra.mxu0 0
    %64 = vmatpush.bf16.msra.mxu0 0
    %65 = vmatpush.bf16.msra.mxu0 0
    %66 = vmatpush.bf16.msra.mxu0 %v57
    %67 = vmatmul.bf16.gmra.mxu0 %v53
    %v68 = vpop.f32.mrf.mxu0
    %v69 = vadd.f32 0.0, %v68
    %v70 = vpop.f32.mrf.mxu0
    %71 = vdwg.mxu0
    %v72 = vpack.c.bf16 %v69, %v69
    %v80 = vunpack.c.l.b16 %v25
    %v81 = vunpack.c.l.b16 %v26
    %v82 = vunpack.c.l.b16 %v27
    %v83 = vunpack.c.l.b16 %v28
    %v84 = vunpack.c.l.b16 %v29
    %v85 = vunpack.c.l.b16 %v30
    %v86 = vunpack.c.l.b16 %v31
    %v87 = vpack.c.b16 %v81, %v80
    %v88 = vpack.c.b16 %v83, %v82
    %v89 = vpack.c.b16 %v85, %v84
    %v90 = vpack.c.b16 %v86, %v86
    %vm91 = vcmask 261120
    %v93 = vsel %vm91, %v72, 0
    %v96 = vsel %vm91, %v87, 0
    %v99 = vsel %vm91, %v88, 0
    %v102 = vsel %vm91, %v89, 0
    %v105 = vsel %vm91, %v90, 0
    %107 = vmatpush.bf16.xpose.msra.mxu0 0
    %108 = vmatpush.bf16.xpose.msra.mxu0 0
    %109 = vmatpush.bf16.xpose.msra.mxu0 0
    %110 = vmatpush.bf16.xpose.msra.mxu0 0
    %111 = vmatpush.bf16.xpose.msra.mxu0 %v105
    %112 = vmatpush.bf16.xpose.msra.mxu0 %v102
    %113 = vmatpush.bf16.xpose.msra.mxu0 %v99
    %114 = vmatpush.bf16.xpose.msra.mxu0 %v96
    %115 = vmatmul.bf16.gmra.mxu0 %v93
    %v116 = vpop.f32.mrf.mxu0
    %v117 = vadd.f32 0.0, %v116
    %v118 = vpop.f32.mrf.mxu0
    %119 = vdwg.mxu0
    %v120 = vperm.slane %v35, 0
    %v121 = vlaneseq
    %v122 = vshrl.u32 %v121, 7
    %124 = vset.pattern.permute.xlu0 %v122
    %125 = vperm.xlu0 %124, %v120
    %v126 = vpop.permute.xlu0 %125
    %v127 = vperm.slane %v35, 1
    %v128 = vlaneseq
    %v129 = vshrl.u32 %v128, 7
    %131 = vset.pattern.permute.xlu0 %v129
    %132 = vperm.xlu0 %131, %v127
    %v133 = vpop.permute.xlu0 %132
    %vm134 = vcmp.eq.s32.totalorder %v126, %v38
    %vm135 = vcmp.eq.s32.totalorder %v133, %v38
    %v137 = vrot.slane %v117, 1
    %v138 = vperm.slane %v117, 0
    %v139 = vperm.slane %v137, 0
    %v142 = vsel %vm134, %v138, 0.0
    %v143 = vsel %vm135, %v139, 0.0
    %vm144 = vcmask 408576
    %v145 = vsel %vm144, %v142, 0.0
    %146 = vadd.xlane.f32.xlu0 %v145
    %v147 = vpop.xlane.xlu0 %146
    %v148 = vsel %vm144, %v143, 0.0
    %149 = vadd.xlane.f32.xlu0 %v148
    %v150 = vpop.xlane.xlu0 %149
    %v153 = vperm.slane %v147, %v38
    %v154 = vperm.slane %v150, %v38
    %vm155 = vcmask 1041409
    %v156 = vsel %vm155, %v154, %v153
    %vm158 = vcmask 58368
    %v159 = vsel %vm158, %v156, -inf
    %160 = vmax.xlane.f32.xlu0 %v159
    %v161 = vpop.xlane.xlu0 %160
    %v163 = vperm.slane %v161, 0
    %v164 = vperm.slane %v161, 1
    %v167 = vsub.f32 %v147, %v163
    %v168 = vsub.f32 %v150, %v164
    %v169 = vmul.f32 %v167, 1.442695
    %v170 = vpow.pop %v169
    %v171 = vmul.f32 %v168, 1.442695
    %v172 = vpow.pop %v171
    %175 = vset.pattern.permute.xlu0 0
    %176 = vperm.xlu0 %175, %v170
    %v177 = vpop.permute.xlu0 %176
    %178 = vset.pattern.permute.xlu0 0
    %179 = vperm.xlu0 %178, %v172
    %v180 = vpop.permute.xlu0 %179
    %v181 = vperm.slane %v177, %v38
    %v182 = vperm.slane %v180, %v38
    %v183 = vsel %vm155, %v182, %v181
    %v185 = vsel %vm158, %v183, 0.0
    %186 = vadd.xlane.f32.xlu0 %v185
    %v187 = vpop.xlane.xlu0 %186
    %v188 = vlog2.pop %v187
    %v189 = vmul.f32 %v188, 0.6931472
    %v191 = vperm.slane %v189, 0
    %v192 = vperm.slane %v189, 1
    %v195 = vsub.f32 %v167, %v191
    %v196 = vsub.f32 %v168, %v192
    %v198 = vperm.slane %v36, 0
    %v199 = vlaneseq
    %v200 = vshrl.u32 %v199, 7
    %202 = vset.pattern.permute.xlu0 %v200
    %203 = vperm.xlu0 %202, %v198
    %v204 = vpop.permute.xlu0 %203
    %v205 = vperm.slane %v36, 1
    %v206 = vlaneseq
    %v207 = vshrl.u32 %v206, 7
    %209 = vset.pattern.permute.xlu0 %v207
    %210 = vperm.xlu0 %209, %v205
    %v211 = vpop.permute.xlu0 %210
    %v214 = vmul.f32 %v195, %v204
    %v215 = vmul.f32 %v196, %v211
    %218 = vset.pattern.permute.xlu0 0
    %219 = vperm.xlu0 %218, %v214
    %v220 = vpop.permute.xlu0 %219
    %221 = vset.pattern.permute.xlu0 0
    %222 = vperm.xlu0 %221, %v215
    %v223 = vpop.permute.xlu0 %222
    %v224 = vperm.slane %v220, %v38
    %v225 = vperm.slane %v223, %v38
    %v226 = vsel %vm155, %v225, %v224
    %v228 = vsel %vm158, %v226, 0.0
    %229 = vadd.xlane.f32.xlu0 %v228
    %v230 = vpop.xlane.xlu0 %229
    %v231 = vrot.slane %v230, 4
    %v232 = vadd.f32 %v230, %v231
    %v233 = vrot.slane %v232, 2
    %v234 = vadd.f32 %v232, %v233
    %v235 = vrot.slane %v234, 1
    %v236 = vadd.f32 %v234, %v235
    %s237 = vtos %v236
    %s238 = scalar_lea.smem [#allocation2], 0
    %239 = sst [smem:[%s238]] %s237
    %v240 = vsel %vm158, %v36, 0.0
    %241 = vadd.xlane.f32.xlu0 %v240
    %v242 = vpop.xlane.xlu0 %241
    %v243 = vrot.slane %v242, 4
    %v244 = vadd.f32 %v242, %v243
    %v245 = vrot.slane %v244, 2
    %v246 = vadd.f32 %v244, %v245
    %v247 = vrot.slane %v246, 1
    %v248 = vadd.f32 %v246, %v247
    %s249 = vtos %v248
    %s250 = scalar_lea.smem [#allocation4], 0
    %251 = sst [smem:[%s250]] %s249
    // Predicated region
    $region22: #{item_language_model_forward.1} parent=1 // pred_check
      _
    $region23: #{item_language_model_forward.1} parent=1 // pred_check_branch
      %253 = sbr.rel (0) target = $region25
    $region24: #{item_language_model_forward.1} parent=1 // pred_region
      %255 = vsyncadd [#allocation3], 0
      %s257 = sshll.u32 %s5, 4
      %s258 = int_to_ptr.hbm [resolvable:$true] %s257
      %260 = dma.smem_to_hbm [#allocation2], 16, %s258, [#allocation3]
    $region25: #{item_language_model_forward.1} parent=1 // pred_fallthru
      _
    // Predicated region
    $region26: #{item_language_model_forward.1} parent=1 // pred_check
      _
    $region27: #{item_language_model_forward.1} parent=1 // pred_check_branch
      %262 = sbr.rel (0) target = $region29
    $region28: #{item_language_model_forward.1} parent=1 // pred_region
      %264 = vsyncadd [#allocation5], 0
      %s266 = sshll.u32 %s6, 4
      %s267 = int_to_ptr.hbm [resolvable:$true] %s266
      %269 = dma.smem_to_hbm [#allocation4], 16, %s267, [#allocation5]
    $region29: #{item_language_model_forward.1} parent=1 // pred_fallthru
      _
    // Predicated region
    $region30: #{item_language_model_forward.1} parent=1 // pred_check
      _
    $region31: #{item_language_model_forward.1} parent=1 // pred_check_branch
      %271 = sbr.rel (0) target = $region33
    $region32: #{item_language_model_forward.1} parent=1 // pred_region
      %273 = dma.done [#allocation3], 16
    $region33: #{item_language_model_forward.1} parent=1 // pred_fallthru
      _
    // Predicated region
    $region34: #{item_language_model_forward.1} parent=1 // pred_check
      _
    $region35: #{item_language_model_forward.1} parent=1 // pred_check_branch
      %275 = sbr.rel (0) target = $region37
    $region36: #{item_language_model_forward.1} parent=1 // pred_region
      %277 = dma.done [#allocation5], 16
    $region37: #{item_language_model_forward.1} parent=1 // pred_fallthru
      _
    %278 = sfence
    %279 = vsyncpa [#allocation3], 1
    %280 = vsyncpa [#allocation5], 1

</llo_original>
